<compile_context>
chip_gen: v6e
topology: v6e:2x2x1
jax: 0.10.0
libtpu: 0.0.40
codegen_flags: <defaults>
</compile_context>

<pallas_src>
import functools

import jax
import jax.numpy as jnp
from jax import lax
from jax.experimental import pallas as pl
from jax.experimental.pallas import tpu as pltpu


def _vq_kernel(z_ref, w_ref, winv_ref, zq_ref, idx_ref, sse_ref, *,
               use_bf16_scores=False):
    z = z_ref[...].astype(jnp.float32)      # (D, TN)  raw pixels, channel-major
    w = w_ref[...].astype(jnp.float32)      # (K, D)   raw codebook rows
    winv = winv_ref[...]                    # (K, 1)   1 / max(||w_k||, eps)

    if use_bf16_scores:
        # TODO(synk): enable on v6e/v7x for large K/D; near-ties may flip vs f32.
        lhs, rhs = w.astype(jnp.bfloat16), z.astype(jnp.bfloat16)
    else:
        lhs, rhs = w, z

    # scores[k, n] = (w_k . z_n) / ||w_k||.  argmax_k equals the reference
    # argmin_k ||l2norm(z_n) - l2norm(w_k)||^2: the 1/||z_n|| factor is a
    # positive per-column scale and cannot change the per-column argmax.
    cross_t = lax.dot_general(lhs, rhs,
                              dimension_numbers=(((1,), (0,)), ((), ())),
                              preferred_element_type=jnp.float32)  # (K, TN)
    cross_t = cross_t * winv                                       # row scale

    K = cross_t.shape[0]
    max_c = jnp.max(cross_t, axis=0, keepdims=True)                # (1, TN)
    iota_k = lax.broadcasted_iota(jnp.int32, cross_t.shape, 0)     # (K, TN)
    # First-index tie-break, matching torch.argmin.
    idx_row = jnp.min(jnp.where(cross_t == max_c, iota_k, K),
                      axis=0, keepdims=True)                       # (1, TN)
    onehot_t = (iota_k == idx_row).astype(jnp.float32)             # (K, TN)

    # Gather RAW codebook rows on the MXU: w^T (D, K) @ onehot (K, TN) -> (D, TN),
    # already in the channel-major output layout (no transpose needed anywhere).
    zq = lax.dot_general(w, onehot_t,
                         dimension_numbers=(((0,), (0,)), ((), ())),
                         preferred_element_type=jnp.float32)       # (D, TN)

    zq_ref[...] = zq.astype(zq_ref.dtype)
    idx_ref[...] = idx_row

    # Per-pixel SSE: sublane-only reduction over D; lane sum finishes in wrapper.
    diff = zq - z
    sse_ref[...] = jnp.sum(diff * diff, axis=0, keepdims=True)     # (1, TN)


def _estimate_vmem_bytes(K, D, thw):
    f32 = 4
    io = 2 * 2 * D * thw * f32            # z + zq tiles, double-buffered
    io += 2 * 2 * thw * (4 + 4)           # idx + sse rows, double-buffered
    codebook = 2 * (K * D * f32 + K * f32)  # raw codebook + inv-norm, double-buffered
    intermediates = 4 * K * thw * f32     # cross_t / select / onehot + slack
    return io + codebook + intermediates


def _pick_block_hw(hw, K, D, budget_bytes, want_split):
    cands = [c for c in (2048, 1024, 512, 256, 128) if c <= hw and hw % c == 0]
    if not cands:
        cands = [hw]  # full lane extent is always a legal block
    fitting = [c for c in cands if _estimate_vmem_bytes(K, D, c) <= budget_bytes]
    if not fitting:
        # TODO(synk): for very large codebooks add a trailing "arbitrary" K grid
        # axis with a running max/argmax VMEM scratch (flash-style) instead of
        # materializing the full (K, tile) score matrix.
        raise ValueError(
            f"VQ tile does not fit the VMEM budget (K={K}, D={D}, hw={hw}); "
            "a K-tiled variant is required.")
    thw = fitting[0]
    if want_split and thw == hw and len(fitting) > 1:
        # Keep >= 2 grid steps so v7x's second TensorCore is not idle.
        thw = fitting[1]
    return thw


def vector_quantize(z_nchw, codebook, beta=0.25, block_hw=None,
                    use_bf16_scores=False):
    """Pallas implementation of VectorQuantizer.forward.

    Args:
      z_nchw:   (B, C, H, W) float array (PyTorch conv layout).
      codebook: (num_tokens, codebook_dim) embedding weight, codebook_dim == C.
    Returns:
      (loss, z_q_nchw, encoding_indices) matching the PyTorch forward values.
    """
    B, C, H, W = z_nchw.shape
    K, D = codebook.shape
    assert D == C, "codebook_dim must equal the channel dim"
    HW = H * W
    n_pix = B * HW

    # Channel-major 3-D view: pure reshape, no HBM transpose pass.
    z3 = z_nchw.reshape(B, C, HW)

    vmem_limit = 32 * 1024 * 1024
    if block_hw is None:
        block_hw = _pick_block_hw(HW, K, D, budget_bytes=vmem_limit // 2,
                                  want_split=(B == 1))
    assert HW % block_hw == 0, "H*W must be a multiple of block_hw"
    nhw = HW // block_hw

    # Grid-invariant codebook inverse norms, computed once outside the kernel.
    w_inv = 1.0 / jnp.maximum(
        jnp.linalg.norm(codebook.astype(jnp.float32), axis=-1, keepdims=True),
        1e-12)                                                      # (K, 1)

    kernel = functools.partial(_vq_kernel, use_bf16_scores=use_bf16_scores)

    # TODO(synk): single-buffer the grid-invariant codebook specs via
    # pipeline_mode=pl.Buffered(1) once verified on all target generations.
    grid_spec = pltpu.PrefetchScalarGridSpec(
        num_scalar_prefetch=0,
        grid=(B, nhw),
        in_specs=[
            pl.BlockSpec((None, C, block_hw), lambda b, i: (b, 0, i)),  # z tile
            pl.BlockSpec((K, D), lambda b, i: (0, 0)),                  # codebook
            pl.BlockSpec((K, 1), lambda b, i: (0, 0)),                  # inv norms
        ],
        out_specs=[
            pl.BlockSpec((None, C, block_hw), lambda b, i: (b, 0, i)),  # z_q tile
            pl.BlockSpec((1, block_hw), lambda b, i: (0, b * nhw + i)),  # indices
            pl.BlockSpec((1, block_hw), lambda b, i: (0, b * nhw + i)),  # SSE/pixel
        ],
    )

    zq3, idx_row, sse_row = pl.pallas_call(
        kernel,
        grid_spec=grid_spec,
        out_shape=(
            jax.ShapeDtypeStruct((B, C, HW), z_nchw.dtype),
            jax.ShapeDtypeStruct((1, n_pix), jnp.int32),
            jax.ShapeDtypeStruct((1, n_pix), jnp.float32),
        ),
        compiler_params=pltpu.CompilerParams(
            dimension_semantics=("parallel", "parallel"),
            vmem_limit_bytes=vmem_limit),
    )(z3, codebook, w_inv)

    mse = jnp.sum(sse_row) / (n_pix * D)
    # loss = beta * mse(z_q.detach(), z) + mse(z_q, z.detach()); both terms have
    # the same forward value -> (1 + beta) * mse.
    loss = (1.0 + beta) * mse

    # z_q = z + (z_q - z).detach() -> forward value is simply z_q; already NCHW.
    z_q = zq3.reshape(B, C, H, W)
    encoding_indices = idx_row.reshape(n_pix)
    return loss, z_q, encoding_indices


def _reference_forward(z_nchw, codebook, beta=0.25):
    """Pure-JAX reference mirroring the PyTorch forward (for validation)."""
    B, C, H, W = z_nchw.shape
    z_bhwc = jnp.transpose(z_nchw, (0, 2, 3, 1))
    zf = z_bhwc.reshape(-1, C)

    def l2n(t):
        return t / jnp.maximum(jnp.linalg.norm(t, axis=-1, keepdims=True), 1e-12)

    znf = l2n(zf)
    wn = l2n(codebook)
    d = (jnp.sum(znf ** 2, axis=1, keepdims=True)
         + jnp.sum(wn ** 2, axis=1)
         - 2.0 * znf @ wn.T)
    idx = jnp.argmin(d, axis=1)
    z_q = codebook[idx].reshape(z_bhwc.shape)
    mse = jnp.mean((z_q - z_bhwc) ** 2)
    loss = (1.0 + beta) * mse
    return loss, jnp.transpose(z_q, (0, 3, 1, 2)), idx


if __name__ == "__main__":
    # Module config: num_tokens=128, codebook_dim=32, beta=0.25
    num_tokens, codebook_dim, beta = 128, 32, 0.25
    B, C, H, W = 2, codebook_dim, 16, 16     # N = B*H*W = 512

    key = jax.random.PRNGKey(0)
    kz, kw = jax.random.split(key)
    z = jax.random.normal(kz, (B, C, H, W), dtype=jnp.float32)
    # nn.Embedding default init: N(0, 1)
    codebook = jax.random.normal(kw, (num_tokens, codebook_dim), dtype=jnp.float32)

    loss, z_q, idx = jax.block_until_ready(
        jax.jit(lambda a, b: vector_quantize(a, b, beta=beta))(z, codebook))

    # sanity check against pure-JAX reference
    ref_loss, ref_zq, ref_idx = _reference_forward(z, codebook, beta=beta)
    assert jnp.allclose(loss, ref_loss, atol=1e-3, rtol=1e-3), (loss, ref_loss)
    assert jnp.allclose(z_q, ref_zq, atol=1e-3, rtol=1e-3)

    print("KERNEL_OK")
</pallas_src>

<mosaic_0001>
module attributes {stable_mosaic.version = 11 : i64} {
  func.func @_vq_kernel(%arg0: i32, %arg1: i32, %arg2: memref<1x32x256xf32, #tpu.memory_space<vmem>>, %arg3: memref<128x32xf32, #tpu.memory_space<vmem>>, %arg4: memref<128x1xf32, #tpu.memory_space<vmem>>, %arg5: memref<1x32x256xf32, #tpu.memory_space<vmem>>, %arg6: memref<1x256xi32, #tpu.memory_space<vmem>>, %arg7: memref<1x256xf32, #tpu.memory_space<vmem>>) attributes {dimension_semantics = [#tpu.dimension_semantics<parallel>, #tpu.dimension_semantics<parallel>], iteration_bounds = array<i64: 2, 1>, scalar_prefetch = 0 : i64, scratch_operands = 0 : i64, tpu.core_type = #tpu.core_type<tc>, window_params = [{transform_indices = @transform_0, window_bounds = array<i64: 1, 32, 256>}, {pipeline_mode = #tpu.pipeline_mode<synchronous>, transform_indices = @transform_1, window_bounds = array<i64: 128, 32>}, {pipeline_mode = #tpu.pipeline_mode<synchronous>, transform_indices = @transform_2, window_bounds = array<i64: 128, 1>}, {transform_indices = @transform_3, window_bounds = array<i64: 1, 32, 256>}, {transform_indices = @transform_4, window_bounds = array<i64: 1, 256>}, {transform_indices = @transform_5, window_bounds = array<i64: 1, 256>}]} {
    %c0 = arith.constant 0 : index
    %c0_0 = arith.constant 0 : index
    %c0_1 = arith.constant 0 : index
    %0 = vector.load %arg2[%c0, %c0_0, %c0_1] : memref<1x32x256xf32, #tpu.memory_space<vmem>>, vector<1x32x256xf32>
    %1 = vector.shape_cast %0 : vector<1x32x256xf32> to vector<32x256xf32>
    %c0_2 = arith.constant 0 : index
    %c0_3 = arith.constant 0 : index
    %2 = vector.load %arg3[%c0_2, %c0_3] : memref<128x32xf32, #tpu.memory_space<vmem>>, vector<128x32xf32>
    %c0_4 = arith.constant 0 : index
    %c0_5 = arith.constant 0 : index
    %3 = vector.load %arg4[%c0_4, %c0_5] : memref<128x1xf32, #tpu.memory_space<vmem>>, vector<128x1xf32>
    %cst = arith.constant dense<0.000000e+00> : vector<128x256xf32>
    %4 = tpu.matmul %2, %1, %cst {dimension_numbers = #tpu.dot_dimension_numbers<[1], [0], [0], [1], [0, 0, 1, 1], [], []>} : vector<128x32xf32>, vector<32x256xf32>, vector<128x256xf32> -> vector<128x256xf32>
    %5 = vector.broadcast %3 : vector<128x1xf32> to vector<128x256xf32>
    %6 = arith.mulf %4, %5 : vector<128x256xf32>
    %cst_6 = arith.constant dense<0xFF800000> : vector<256xf32>
    %7 = vector.multi_reduction <maximumf>, %6, %cst_6 [0] : vector<128x256xf32> to vector<256xf32>
    %8 = vector.shape_cast %7 : vector<256xf32> to vector<1x256xf32>
    %9 = tpu.iota {dimensions = array<i32: 0>} : vector<128x256xi32>
    %10 = vector.broadcast %8 : vector<1x256xf32> to vector<128x256xf32>
    %11 = arith.cmpf oeq, %6, %10 : vector<128x256xf32>
    %c128_i32 = arith.constant 128 : i32
    %12 = vector.broadcast %c128_i32 : i32 to vector<128x256xi32>
    %13 = arith.select %11, %9, %12 : vector<128x256xi1>, vector<128x256xi32>
    %cst_7 = arith.constant dense<2147483647> : vector<256xi32>
    %14 = vector.multi_reduction <minsi>, %13, %cst_7 [0] : vector<128x256xi32> to vector<256xi32>
    %15 = vector.shape_cast %14 : vector<256xi32> to vector<1x256xi32>
    %16 = vector.broadcast %15 : vector<1x256xi32> to vector<128x256xi32>
    %17 = arith.cmpi eq, %9, %16 : vector<128x256xi32>
    %18 = arith.extui %17 : vector<128x256xi1> to vector<128x256xi32>
    %19 = arith.sitofp %18 : vector<128x256xi32> to vector<128x256xf32>
    %cst_8 = arith.constant dense<0.000000e+00> : vector<32x256xf32>
    %20 = tpu.matmul %2, %19, %cst_8 {dimension_numbers = #tpu.dot_dimension_numbers<[0], [0], [1], [1], [0, 1, 1, 1], [], []>} : vector<128x32xf32>, vector<128x256xf32>, vector<32x256xf32> -> vector<32x256xf32>
    %c0_9 = arith.constant 0 : index
    %c0_10 = arith.constant 0 : index
    %c0_11 = arith.constant 0 : index
    %21 = vector.load %arg5[%c0_9, %c0_10, %c0_11] : memref<1x32x256xf32, #tpu.memory_space<vmem>>, vector<1x32x256xf32>
    %22 = vector.shape_cast %21 : vector<1x32x256xf32> to vector<32x256xf32>
    %23 = vector.shape_cast %20 : vector<32x256xf32> to vector<1x32x256xf32>
    tpu.vector_store %arg5[%c0_9, %c0_10, %c0_11], %23 {strides = array<i32>} : memref<1x32x256xf32, #tpu.memory_space<vmem>>, vector<1x32x256xf32>,
    %c0_12 = arith.constant 0 : index
    %c0_13 = arith.constant 0 : index
    %24 = vector.load %arg6[%c0_12, %c0_13] : memref<1x256xi32, #tpu.memory_space<vmem>>, vector<1x256xi32>
    tpu.vector_store %arg6[%c0_12, %c0_13], %15 {strides = array<i32>} : memref<1x256xi32, #tpu.memory_space<vmem>>, vector<1x256xi32>,
    %25 = arith.subf %20, %1 : vector<32x256xf32>
    %26 = arith.mulf %25, %25 : vector<32x256xf32>
    %cst_14 = arith.constant dense<0.000000e+00> : vector<256xf32>
    %27 = vector.multi_reduction <add>, %26, %cst_14 [0] : vector<32x256xf32> to vector<256xf32>
    %28 = vector.shape_cast %27 : vector<256xf32> to vector<1x256xf32>
    %c0_15 = arith.constant 0 : index
    %c0_16 = arith.constant 0 : index
    %29 = vector.load %arg7[%c0_15, %c0_16] : memref<1x256xf32, #tpu.memory_space<vmem>>, vector<1x256xf32>
    tpu.vector_store %arg7[%c0_15, %c0_16], %28 {strides = array<i32>} : memref<1x256xf32, #tpu.memory_space<vmem>>, vector<1x256xf32>,
    return
  }
  func.func @transform_0(%arg0: i32, %arg1: i32) -> (i32, i32, i32) {
    %c0_i32 = arith.constant 0 : i32
    %c0_i32_0 = arith.constant 0 : i32
    return %arg0, %c0_i32, %arg1 : i32, i32, i32
  }
  func.func @transform_1(%arg0: i32, %arg1: i32) -> (i32, i32) {
    %c0_i32 = arith.constant 0 : i32
    %c0_i32_0 = arith.constant 0 : i32
    %c0_i32_1 = arith.constant 0 : i32
    return %c0_i32, %c0_i32_0 : i32, i32
  }
  func.func @transform_2(%arg0: i32, %arg1: i32) -> (i32, i32) {
    %c0_i32 = arith.constant 0 : i32
    %c0_i32_0 = arith.constant 0 : i32
    %c0_i32_1 = arith.constant 0 : i32
    return %c0_i32, %c0_i32_0 : i32, i32
  }
  func.func @transform_3(%arg0: i32, %arg1: i32) -> (i32, i32, i32) {
    %c0_i32 = arith.constant 0 : i32
    %c0_i32_0 = arith.constant 0 : i32
    return %arg0, %c0_i32, %arg1 : i32, i32, i32
  }
  func.func @transform_4(%arg0: i32, %arg1: i32) -> (i32, i32) {
    %c1_i32 = arith.constant 1 : i32
    %0 = arith.muli %arg0, %c1_i32 : i32
    %1 = arith.addi %0, %arg1 : i32
    %c0_i32 = arith.constant 0 : i32
    %c0_i32_0 = arith.constant 0 : i32
    return %c0_i32, %1 : i32, i32
  }
  func.func @transform_5(%arg0: i32, %arg1: i32) -> (i32, i32) {
    %c1_i32 = arith.constant 1 : i32
    %0 = arith.muli %arg0, %c1_i32 : i32
    %1 = arith.addi %0, %arg1 : i32
    %c0_i32 = arith.constant 0 : i32
    %c0_i32_0 = arith.constant 0 : i32
    return %c0_i32, %1 : i32, i32
  }
}

</mosaic_0001>

<llo_original>
// kernel: _lambda_.1
$region0: #{_lambda_.1}
  #allocation0 [shape = 'u32[]', space=smem, size = 0x4, offset = 0x4, fixed_abs, tag = 'smem constant byte address 0x4 - core index']
  #allocation1 [shape = 'u32[144,128]{1,0:T(1,128)}', space=vmem, size = 0x12000, scoped, tag = 'internal scratch']
  %s0 = inlined_call_operand.vmem [shape: f32[2,32,256], index: 0, kind: input, shape index: {}]
  %s1 = inlined_call_operand.vmem [shape: f32[128,32], index: 1, kind: input, shape index: {}]
  %s2 = inlined_call_operand.vmem [shape: f32[128,1], index: 2, kind: input, shape index: {}]
  %s3 = inlined_call_operand.vmem [shape: f32[2,32,256], index: 3, kind: output, shape index: {0}]
  %s4 = inlined_call_operand.hbm [shape: s32[1,512], index: 4, kind: output, shape index: {1}]
  %s5 = inlined_call_operand.vmem [shape: f32[1,512], index: 5, kind: output, shape index: {2}]
  %6 = xla_tuple %s3, %s4, %s5
  %s7 = sld [smem:[#allocation0]]
  $region61: #{_lambda_.1} parent=0
    _
  %s9 = ssub.s32 1, %s7
  %s10 = scalar_select 0, %s9, %s7
  $region1: #{_lambda_.1} parent=0
    #allocation2 [shape = 'u8[2048]{0}', space=vmem, size = 0x800, scoped, tag = 'output window, operand 1']
    #allocation3 [shape = 's32[2]{0}', space=sflag, size = 0x8, scoped, tag = 'scoped memory for _lambda_.1']
    %11 = vsyncpa [#allocation3], 0
    %s12 = scalar_lea.sflag [#allocation3], 1
    %13 = vsyncpa %s12, 0
    loop: start=0, step=1, limit=4
    $region2: #{_lambda_.1} parent=1 // loop_pre_header
      _
    $region3: #{_lambda_.1} parent=1 // loop_header
      %s15 = sphi 0, %s19
      %p16 = scmp.ge.s32.totalorder %s15, 4
      %s22 = sphi 0, %s34
      %s23 = sphi 0, %s30
      %s24 = sphi 0, %s22
      %s25 = sphi 0, %s23
      %s26 = sphi 0, %s24
      %s27 = sphi 0, %s25
      %s39 = sphi 0, %s41
      %s42 = sphi 0, %s39
      %s43 = sphi 0, %s42
      %s59 = sphi 0, %s43
      %s63 = sphi 0, %s63
      %s65 = sphi 0, %s63
      %s66 = sphi 0, %s65
      %s80 = sphi 0, %s66
      %s84 = sphi 0, %s84
      %s86 = sphi 0, %s84
      %s87 = sphi 0, %s86
      %s101 = sphi 0, %s87
      %s109 = sphi 0, %s111
      %s112 = sphi 0, %s109
      %s113 = sphi 0, %s112
      %s129 = sphi 0, %s113
      %s137 = sphi 0, %s139
      %s140 = sphi 0, %s137
      %s141 = sphi 0, %s140
      %s157 = sphi 0, %s141
      %s165 = sphi 0, %s167
      %s168 = sphi 0, %s165
      %s169 = sphi 0, %s168
      %s185 = sphi 0, %s169
    $region4: #{_lambda_.1} parent=1 // loop_header_branch
      %18 = sbr.rel (%p16) target = $region8
    $region5: #{_lambda_.1} parent=1 // loop_body
      %s20 = ssub.s32 %s15, 1
      %s21 = ssub.s32 %s15, 2
      %s28 = sadd.s32 1, %s23
      %p29 = scmp.ge.s32.totalorder %s28, 1
      %s30 = scalar_select %p29, 0, %s28
      %s31 = sadd.s32 1, %s22
      %s32 = scalar_select %p29, %s31, %s22
      %p33 = scmp.ge.s32.totalorder %s32, 2
      %s34 = scalar_select %p33, 0, %s32
      %s35 = ssub.s32 %s22, %s34
      %s36 = ssub.s32 %s23, %s30
      %s37 = sor.u32 %s35, %s36
      %p38 = scmp.eq.s32.totalorder %s37, 0
      %s40 = sadd.s32 %s39, 1
      %s41 = scalar_select %p38, %s39, %s40
      %p44 = pneg %p38
      %p45 = scmp.eq.s32.totalorder %s15, 1
      %p46 = por %p44, %p45
      %p47 = scmp.ne.s32.totalorder %s39, %s42
      %p48 = scmp.eq.s32.totalorder %s15, 0
      %p49 = por %p47, %p48
      %p50 = scmp.ne.s32.totalorder %s39, %s42
      %p51 = scmp.eq.s32.totalorder %s20, 1
      %p52 = por %p50, %p51
      %p53 = scmp.ne.s32.totalorder %s42, %s43
      %p54 = scmp.eq.s32.totalorder %s20, 0
      %p55 = por %p53, %p54
      %p56 = scmp.ne.s32.totalorder %s42, %s43
      %p57 = scmp.eq.s32.totalorder %s21, 1
      %p58 = por %p56, %p57
      %p60 = scmp.ne.s32.totalorder %s43, %s59
      %p61 = scmp.eq.s32.totalorder %s21, 0
      %p62 = por %p60, %p61
      %s64 = sadd.s32 %s63, 1
      %p67 = scmp.eq.s32.totalorder %s15, 1
      %p68 = scmp.ne.s32.totalorder %s63, %s65
      %p69 = scmp.eq.s32.totalorder %s15, 0
      %p70 = por %p68, %p69
      %p71 = scmp.ne.s32.totalorder %s63, %s65
      %p72 = scmp.eq.s32.totalorder %s20, 1
      %p73 = por %p71, %p72
      %p74 = scmp.ne.s32.totalorder %s65, %s66
      %p75 = scmp.eq.s32.totalorder %s20, 0
      %p76 = por %p74, %p75
      %p77 = scmp.ne.s32.totalorder %s65, %s66
      %p78 = scmp.eq.s32.totalorder %s21, 1
      %p79 = por %p77, %p78
      %p81 = scmp.ne.s32.totalorder %s66, %s80
      %p82 = scmp.eq.s32.totalorder %s21, 0
      %p83 = por %p81, %p82
      %s85 = sadd.s32 %s84, 1
      %p88 = scmp.eq.s32.totalorder %s15, 1
      %p89 = scmp.ne.s32.totalorder %s84, %s86
      %p90 = scmp.eq.s32.totalorder %s15, 0
      %p91 = por %p89, %p90
      %p92 = scmp.ne.s32.totalorder %s84, %s86
      %p93 = scmp.eq.s32.totalorder %s20, 1
      %p94 = por %p92, %p93
      %p95 = scmp.ne.s32.totalorder %s86, %s87
      %p96 = scmp.eq.s32.totalorder %s20, 0
      %p97 = por %p95, %p96
      %p98 = scmp.ne.s32.totalorder %s86, %s87
      %p99 = scmp.eq.s32.totalorder %s21, 1
      %p100 = por %p98, %p99
      %p102 = scmp.ne.s32.totalorder %s87, %s101
      %p103 = scmp.eq.s32.totalorder %s21, 0
      %p104 = por %p102, %p103
      %s105 = ssub.s32 %s22, %s34
      %s106 = ssub.s32 %s23, %s30
      %s107 = sor.u32 %s105, %s106
      %p108 = scmp.eq.s32.totalorder %s107, 0
      %s110 = sadd.s32 %s109, 1
      %s111 = scalar_select %p108, %s109, %s110
      %p114 = pneg %p108
      %p115 = scmp.eq.s32.totalorder %s15, 1
      %p116 = por %p114, %p115
      %p117 = scmp.ne.s32.totalorder %s109, %s112
      %p118 = scmp.eq.s32.totalorder %s15, 0
      %p119 = por %p117, %p118
      %p120 = scmp.ne.s32.totalorder %s109, %s112
      %p121 = scmp.eq.s32.totalorder %s20, 1
      %p122 = por %p120, %p121
      %p123 = scmp.ne.s32.totalorder %s112, %s113
      %p124 = scmp.eq.s32.totalorder %s20, 0
      %p125 = por %p123, %p124
      %p126 = scmp.ne.s32.totalorder %s112, %s113
      %p127 = scmp.eq.s32.totalorder %s21, 1
      %p128 = por %p126, %p127
      %p130 = scmp.ne.s32.totalorder %s113, %s129
      %p131 = scmp.eq.s32.totalorder %s21, 0
      %p132 = por %p130, %p131
      %s133 = sadd.s32 %s22, %s23
      %s134 = sadd.s32 %s34, %s30
      %s135 = ssub.s32 %s133, %s134
      %p136 = scmp.eq.s32.totalorder %s135, 0
      %s138 = sadd.s32 %s137, 1
      %s139 = scalar_select %p136, %s137, %s138
      %p142 = pneg %p136
      %p143 = scmp.eq.s32.totalorder %s15, 1
      %p144 = por %p142, %p143
      %p145 = scmp.ne.s32.totalorder %s137, %s140
      %p146 = scmp.eq.s32.totalorder %s15, 0
      %p147 = por %p145, %p146
      %p148 = scmp.ne.s32.totalorder %s137, %s140
      %p149 = scmp.eq.s32.totalorder %s20, 1
      %p150 = por %p148, %p149
      %p151 = scmp.ne.s32.totalorder %s140, %s141
      %p152 = scmp.eq.s32.totalorder %s20, 0
      %p153 = por %p151, %p152
      %p154 = scmp.ne.s32.totalorder %s140, %s141
      %p155 = scmp.eq.s32.totalorder %s21, 1
      %p156 = por %p154, %p155
      %p158 = scmp.ne.s32.totalorder %s141, %s157
      %p159 = scmp.eq.s32.totalorder %s21, 0
      %p160 = por %p158, %p159
      %s161 = sadd.s32 %s22, %s23
      %s162 = sadd.s32 %s34, %s30
      %s163 = ssub.s32 %s161, %s162
      %p164 = scmp.eq.s32.totalorder %s163, 0
      %s166 = sadd.s32 %s165, 1
      %s167 = scalar_select %p164, %s165, %s166
      %p170 = pneg %p164
      %p171 = scmp.eq.s32.totalorder %s15, 1
      %p172 = por %p170, %p171
      %p173 = scmp.ne.s32.totalorder %s165, %s168
      %p174 = scmp.eq.s32.totalorder %s15, 0
      %p175 = por %p173, %p174
      %p176 = scmp.ne.s32.totalorder %s165, %s168
      %p177 = scmp.eq.s32.totalorder %s20, 1
      %p178 = por %p176, %p177
      %p179 = scmp.ne.s32.totalorder %s168, %s169
      %p180 = scmp.eq.s32.totalorder %s20, 0
      %p181 = por %p179, %p180
      %p182 = scmp.ne.s32.totalorder %s168, %s169
      %p183 = scmp.eq.s32.totalorder %s21, 1
      %p184 = por %p182, %p183
      %p186 = scmp.ne.s32.totalorder %s169, %s185
      %p187 = scmp.eq.s32.totalorder %s21, 0
      %p188 = por %p186, %p187
      %p189 = scmp.le.s32.totalorder 1, %s15
      %p190 = scmp.lt.s32.totalorder %s15, 3
      %p191 = pnand %p189, %p190
      %p192 = pneg %p191
      // Predicated region
      $region9: #{_lambda_.1} parent=5 // pred_check
        _
      $region10: #{_lambda_.1} parent=5 // pred_check_branch
        %194 = sbr.rel (%p191) target = $region12
      $region11: #{_lambda_.1} parent=5 // pred_region
        %s195 = ssub.s32 %s15, 1
        // Predicated region
        $region13: #{_lambda_.1} parent=11 // pred_check
          %p196 = pneg %p76
        $region14: #{_lambda_.1} parent=11 // pred_check_branch
          %198 = sbr.rel (%p196) target = $region16
        $region15: #{_lambda_.1} parent=11 // pred_region
          _
        $region16: #{_lambda_.1} parent=11 // pred_fallthru
          _
        // Predicated region
        $region17: #{_lambda_.1} parent=11 // pred_check
          %p199 = pneg %p97
        $region18: #{_lambda_.1} parent=11 // pred_check_branch
          %201 = sbr.rel (%p199) target = $region20
        $region19: #{_lambda_.1} parent=11 // pred_region
          _
        $region20: #{_lambda_.1} parent=11 // pred_fallthru
          _
      $region12: #{_lambda_.1} parent=5 // pred_fallthru
        _
      %p202 = scmp.lt.s32.totalorder %s15, 2
      // Predicated region
      $region21: #{_lambda_.1} parent=5 // pred_check
        %p203 = pneg %p202
      $region22: #{_lambda_.1} parent=5 // pred_check_branch
        %205 = sbr.rel (%p203) target = $region24
      $region23: #{_lambda_.1} parent=5 // pred_region
        // Predicated region
        $region25: #{_lambda_.1} parent=23 // pred_check
          %p206 = pneg %p49
        $region26: #{_lambda_.1} parent=23 // pred_check_branch
          %208 = sbr.rel (%p206) target = $region28
        $region27: #{_lambda_.1} parent=23 // pred_region
          %s209 = smul.u32 2, %s23
          %p210 = scmp.lt.s32.totalorder %s22, 1
          %s211 = scalar_select %p210, %s22, 1
          %p212 = scmp.lt.s32.totalorder %s209, 1
          %s213 = scalar_select %p212, %s209, 1
          %s214 = smul.addr %s211, 8
          %s215 = sadd.s32 %s213, %s214
          %s216 = smul.addr %s215, 8
          %s217 = scalar_lea.vmem %s0, %s216
          %s218 = smul.u32 2, %s23
        $region28: #{_lambda_.1} parent=23 // pred_fallthru
          _
      $region24: #{_lambda_.1} parent=5 // pred_fallthru
        _
      %p219 = scmp.le.s32.totalorder 1, %s15
      %p220 = scmp.lt.s32.totalorder %s15, 3
      %p221 = pnand %p219, %p220
      %p222 = pneg %p221
      // Predicated region
      $region29: #{_lambda_.1} parent=5 // pred_check
        _
      $region30: #{_lambda_.1} parent=5 // pred_check_branch
        %224 = sbr.rel (%p221) target = $region32
      $region31: #{_lambda_.1} parent=5 // pred_region
        %s225 = ssub.s32 %s15, 1
        %s226 = smul.u32 2, %s25
        %p227 = scmp.lt.s32.totalorder %s24, 1
        %s228 = scalar_select %p227, %s24, 1
        %p229 = scmp.lt.s32.totalorder %s226, 1
        %s230 = scalar_select %p229, %s226, 1
        %s231 = smul.addr %s228, 8
        %s232 = sadd.s32 %s230, %s231
        %s233 = smul.addr %s232, 8
        %s234 = scalar_lea.vmem %s0, %s233
        %p235 = pneg %p55
        %p236 = pneg %p52
        %p237 = pneg %p76
        %p238 = pneg %p73
        %p239 = pneg %p97
        %p240 = pneg %p94
        %p241 = pneg %p125
        %p242 = pneg %p122
        %s243 = smul.u32 2, %s25
        %p244 = scmp.lt.s32.totalorder %s24, 1
        %s245 = scalar_select %p244, %s24, 1
        %p246 = scmp.lt.s32.totalorder %s243, 1
        %s247 = scalar_select %p246, %s243, 1
        %s248 = smul.addr %s245, 8
        %s249 = sadd.s32 %s247, %s248
        %s250 = smul.addr %s249, 8
        %s251 = scalar_lea.vmem %s3, %s250
        %p252 = pneg %p153
        %p253 = pneg %p150
        %s254 = sand.u32 %s140, 1
        %s255 = scalar_lea.sflag [#allocation3], %s254
        %s256 = sand.u32 %s140, 1
        %s257 = smul.addr %s256, 2
        %s258 = scalar_lea.vmem [#allocation2], %s257
        %p259 = pneg %p181
        %p260 = pneg %p178
        %s261 = sadd.s32 %s24, %s25
        %s262 = smul.u32 2, %s261
        %p263 = scmp.lt.s32.totalorder %s262, 3
        %s264 = scalar_select %p263, %s262, 3
        %s265 = scalar_lea.vmem %s5, %s264
        %s266 = smul.u32 2, %s25
        %p267 = scmp.lt.s32.totalorder %s24, 1
        %s268 = scalar_select %p267, %s24, 1
        %p269 = scmp.lt.s32.totalorder %s266, 1
        %s270 = scalar_select %p269, %s266, 1
        %s271 = smul.addr %s268, 8
        %s272 = sadd.s32 %s270, %s271
        %s273 = smul.addr %s272, 8
        %s274 = scalar_lea.vmem %s0, %s273
        %s275 = smul.u32 2, %s25
        %s276 = smul.u32 2, %s25
        %p277 = scmp.lt.s32.totalorder %s24, 1
        %s278 = scalar_select %p277, %s24, 1
        %p279 = scmp.lt.s32.totalorder %s276, 1
        %s280 = scalar_select %p279, %s276, 1
        %s281 = smul.addr %s278, 8
        %s282 = sadd.s32 %s280, %s281
        %s283 = smul.addr %s282, 8
        %s284 = scalar_lea.vmem %s3, %s283
        %s285 = smul.u32 2, %s25
        %s286 = sadd.s32 %s24, %s25
        %s287 = smul.u32 2, %s286
        %s288 = sadd.s32 %s24, %s25
        %s289 = smul.u32 2, %s288
        %p290 = scmp.lt.s32.totalorder %s289, 3
        %s291 = scalar_select %p290, %s289, 3
        %s292 = scalar_lea.vmem %s5, %s291
        %s293 = sadd.s32 %s24, %s25
        %s294 = smul.u32 2, %s293
        %v295 = vld [vmem:[%s274] sm:$0xff]
        %v296 = vld [vmem:[%s274 + $0x8] sm:$0xff]
        %v297 = vld [vmem:[%s274 + $0x10] sm:$0xff]
        %v298 = vld [vmem:[%s274 + $0x18] sm:$0xff]
        %v299 = vld [vmem:[%s274 + $0x20] sm:$0xff]
        %v300 = vld [vmem:[%s274 + $0x28] sm:$0xff]
        %v301 = vld [vmem:[%s274 + $0x30] sm:$0xff]
        %v302 = vld [vmem:[%s274 + $0x38] sm:$0xff]
        %v303 = vld [vmem:[%s1] sm:$0xff]
        %v304 = vld [vmem:[%s1 + $0x8] sm:$0xff]
        %v305 = vld [vmem:[%s1 + $0x10] sm:$0xff]
        %v306 = vld [vmem:[%s1 + $0x18] sm:$0xff]
        %v307 = vld [vmem:[%s1 + $0x20] sm:$0xff]
        %v308 = vld [vmem:[%s1 + $0x28] sm:$0xff]
        %v309 = vld [vmem:[%s1 + $0x30] sm:$0xff]
        %v310 = vld [vmem:[%s1 + $0x38] sm:$0xff]
        %v311 = vld [vmem:[%s1 + $0x40] sm:$0xff]
        %v312 = vld [vmem:[%s1 + $0x48] sm:$0xff]
        %v313 = vld [vmem:[%s1 + $0x50] sm:$0xff]
        %v314 = vld [vmem:[%s1 + $0x58] sm:$0xff]
        %v315 = vld [vmem:[%s1 + $0x60] sm:$0xff]
        %v316 = vld [vmem:[%s1 + $0x68] sm:$0xff]
        %v317 = vld [vmem:[%s1 + $0x70] sm:$0xff]
        %v318 = vld [vmem:[%s1 + $0x78] sm:$0xff]
        %v319 = vld [vmem:[%s2] sm:$0xff]
        %v320 = vld [vmem:[%s2 + $0x8] sm:$0xff]
        %v321 = vld [vmem:[%s2 + $0x10] sm:$0xff]
        %v322 = vld [vmem:[%s2 + $0x18] sm:$0xff]
        %v323 = vld [vmem:[%s2 + $0x20] sm:$0xff]
        %v324 = vld [vmem:[%s2 + $0x28] sm:$0xff]
        %v325 = vld [vmem:[%s2 + $0x30] sm:$0xff]
        %v326 = vld [vmem:[%s2 + $0x38] sm:$0xff]
        %v327 = vld [vmem:[%s2 + $0x40] sm:$0xff]
        %v328 = vld [vmem:[%s2 + $0x48] sm:$0xff]
        %v329 = vld [vmem:[%s2 + $0x50] sm:$0xff]
        %v330 = vld [vmem:[%s2 + $0x58] sm:$0xff]
        %v331 = vld [vmem:[%s2 + $0x60] sm:$0xff]
        %v332 = vld [vmem:[%s2 + $0x68] sm:$0xff]
        %v333 = vld [vmem:[%s2 + $0x70] sm:$0xff]
        %v334 = vld [vmem:[%s2 + $0x78] sm:$0xff]
        %vm335 = vcmask 261120
        %v337 = vsel %vm335, %v303, 0
        %v340 = vsel %vm335, %v304, 0
        %v343 = vsel %vm335, %v305, 0
        %v346 = vsel %vm335, %v306, 0
        %v349 = vsel %vm335, %v307, 0
        %v352 = vsel %vm335, %v308, 0
        %v355 = vsel %vm335, %v309, 0
        %v358 = vsel %vm335, %v310, 0
        %v361 = vsel %vm335, %v311, 0
        %v364 = vsel %vm335, %v312, 0
        %v367 = vsel %vm335, %v313, 0
        %v370 = vsel %vm335, %v314, 0
        %v373 = vsel %vm335, %v315, 0
        %v376 = vsel %vm335, %v316, 0
        %v379 = vsel %vm335, %v317, 0
        %v382 = vsel %vm335, %v318, 0
        %384 = vmatprep.subr.mxu0 0.0
        %385 = vmatpush1.msra.mxu0 0.0
        %386 = vmatprep.subr.mxu0 0.0
        %387 = vmatpush1.msra.mxu0 0.0
        %388 = vmatprep.subr.mxu0 0.0
        %389 = vmatpush1.msra.mxu0 0.0
        %390 = vmatprep.subr.mxu0 0.0
        %391 = vmatpush1.msra.mxu0 0.0
        %392 = vmatprep.subr.mxu0 0.0
        %393 = vmatpush1.msra.mxu0 0.0
        %394 = vmatprep.subr.mxu0 0.0
        %395 = vmatpush1.msra.mxu0 0.0
        %396 = vmatprep.subr.mxu0 0.0
        %397 = vmatpush1.msra.mxu0 0.0
        %398 = vmatprep.subr.mxu0 0.0
        %399 = vmatpush1.msra.mxu0 0.0
        %400 = vmatprep.subr.mxu0 0.0
        %401 = vmatpush1.msra.mxu0 0.0
        %402 = vmatprep.subr.mxu0 0.0
        %403 = vmatpush1.msra.mxu0 0.0
        %404 = vmatprep.subr.mxu0 0.0
        %405 = vmatpush1.msra.mxu0 0.0
        %406 = vmatprep.subr.mxu0 0.0
        %407 = vmatpush1.msra.mxu0 0.0
        %408 = vmatprep.subr.mxu0 %v302
        %409 = vmatpush1.msra.mxu0 %v301
        %410 = vmatprep.subr.mxu0 %v300
        %411 = vmatpush1.msra.mxu0 %v299
        %412 = vmatprep.subr.mxu0 %v298
        %413 = vmatpush1.msra.mxu0 %v297
        %414 = vmatprep.subr.mxu0 %v296
        %415 = vmatpush1.msra.mxu0 %v295
        %416 = vmatprep.subr.mxu0 0.0
        %417 = vmatpush2.msra.mxu0 0.0
        %418 = vmatprep.subr.mxu0 0.0
        %419 = vmatpush2.msra.mxu0 0.0
        %420 = vmatprep.subr.mxu0 0.0
        %421 = vmatpush2.msra.mxu0 0.0
        %422 = vmatprep.subr.mxu0 0.0
        %423 = vmatpush2.msra.mxu0 0.0
        %424 = vmatprep.subr.mxu0 0.0
        %425 = vmatpush2.msra.mxu0 0.0
        %426 = vmatprep.subr.mxu0 0.0
        %427 = vmatpush2.msra.mxu0 0.0
        %428 = vmatprep.subr.mxu0 0.0
        %429 = vmatpush2.msra.mxu0 0.0
        %430 = vmatprep.subr.mxu0 0.0
        %431 = vmatpush2.msra.mxu0 0.0
        %432 = vmatprep.subr.mxu0 0.0
        %433 = vmatpush2.msra.mxu0 0.0
        %434 = vmatprep.subr.mxu0 0.0
        %435 = vmatpush2.msra.mxu0 0.0
        %436 = vmatprep.subr.mxu0 0.0
        %437 = vmatpush2.msra.mxu0 0.0
        %438 = vmatprep.subr.mxu0 0.0
        %439 = vmatpush2.msra.mxu0 0.0
        %440 = vmatprep.subr.mxu0 0.0
        %441 = vmatpush2.msra.mxu0 0.0
        %442 = vmatprep.subr.mxu0 0.0
        %443 = vmatpush2.msra.mxu0 0.0
        %444 = vmatprep.subr.mxu0 0.0
        %445 = vmatpush2.msra.mxu0 0.0
        %446 = vmatprep.subr.mxu0 0.0
        %447 = vmatpush2.msra.mxu0 0.0
        %448 = vmatprep.mubr.f32.mxu0 0.0
        %449 = vmatmul.mubr.f32.gmra.mxu0 %v337
        %v450 = vpop.f32.mrf.mxu0
        %v451 = vadd.f32 0.0, %v450
        %v452 = vpop.f32.mrf.mxu0
        %v453 = vadd.f32 0.0, %v452
        %454 = vmatprep.mubr.f32.mxu0 0.0
        %455 = vmatmul.mubr.f32.gmra.mxu0 %v340
        %v456 = vpop.f32.mrf.mxu0
        %v457 = vadd.f32 0.0, %v456
        %v458 = vpop.f32.mrf.mxu0
        %v459 = vadd.f32 0.0, %v458
        %460 = vmatprep.mubr.f32.mxu0 0.0
        %461 = vmatmul.mubr.f32.gmra.mxu0 %v343
        %v462 = vpop.f32.mrf.mxu0
        %v463 = vadd.f32 0.0, %v462
        %v464 = vpop.f32.mrf.mxu0
        %v465 = vadd.f32 0.0, %v464
        %466 = vmatprep.mubr.f32.mxu0 0.0
        %467 = vmatmul.mubr.f32.gmra.mxu0 %v346
        %v468 = vpop.f32.mrf.mxu0
        %v469 = vadd.f32 0.0, %v468
        %v470 = vpop.f32.mrf.mxu0
        %v471 = vadd.f32 0.0, %v470
        %472 = vmatprep.mubr.f32.mxu0 0.0
        %473 = vmatmul.mubr.f32.gmra.mxu0 %v349
        %v474 = vpop.f32.mrf.mxu0
        %v475 = vadd.f32 0.0, %v474
        %v476 = vpop.f32.mrf.mxu0
        %v477 = vadd.f32 0.0, %v476
        %478 = vmatprep.mubr.f32.mxu0 0.0
        %479 = vmatmul.mubr.f32.gmra.mxu0 %v352
        %v480 = vpop.f32.mrf.mxu0
        %v481 = vadd.f32 0.0, %v480
        %v482 = vpop.f32.mrf.mxu0
        %v483 = vadd.f32 0.0, %v482
        %484 = vmatprep.mubr.f32.mxu0 0.0
        %485 = vmatmul.mubr.f32.gmra.mxu0 %v355
        %v486 = vpop.f32.mrf.mxu0
        %v487 = vadd.f32 0.0, %v486
        %v488 = vpop.f32.mrf.mxu0
        %v489 = vadd.f32 0.0, %v488
        %490 = vmatprep.mubr.f32.mxu0 0.0
        %491 = vmatmul.mubr.f32.gmra.mxu0 %v358
        %v492 = vpop.f32.mrf.mxu0
        %v493 = vadd.f32 0.0, %v492
        %v494 = vpop.f32.mrf.mxu0
        %v495 = vadd.f32 0.0, %v494
        %496 = vmatprep.mubr.f32.mxu0 0.0
        %497 = vmatmul.mubr.f32.gmra.mxu0 %v361
        %v498 = vpop.f32.mrf.mxu0
        %v499 = vadd.f32 0.0, %v498
        %v500 = vpop.f32.mrf.mxu0
        %v501 = vadd.f32 0.0, %v500
        %502 = vmatprep.mubr.f32.mxu0 0.0
        %503 = vmatmul.mubr.f32.gmra.mxu0 %v364
        %v504 = vpop.f32.mrf.mxu0
        %v505 = vadd.f32 0.0, %v504
        %v506 = vpop.f32.mrf.mxu0
        %v507 = vadd.f32 0.0, %v506
        %508 = vmatprep.mubr.f32.mxu0 0.0
        %509 = vmatmul.mubr.f32.gmra.mxu0 %v367
        %v510 = vpop.f32.mrf.mxu0
        %v511 = vadd.f32 0.0, %v510
        %v512 = vpop.f32.mrf.mxu0
        %v513 = vadd.f32 0.0, %v512
        %514 = vmatprep.mubr.f32.mxu0 0.0
        %515 = vmatmul.mubr.f32.gmra.mxu0 %v370
        %v516 = vpop.f32.mrf.mxu0
        %v517 = vadd.f32 0.0, %v516
        %v518 = vpop.f32.mrf.mxu0
        %v519 = vadd.f32 0.0, %v518
        %520 = vmatprep.mubr.f32.mxu0 0.0
        %521 = vmatmul.mubr.f32.gmra.mxu0 %v373
        %v522 = vpop.f32.mrf.mxu0
        %v523 = vadd.f32 0.0, %v522
        %v524 = vpop.f32.mrf.mxu0
        %v525 = vadd.f32 0.0, %v524
        %526 = vmatprep.mubr.f32.mxu0 0.0
        %527 = vmatmul.mubr.f32.gmra.mxu0 %v376
        %v528 = vpop.f32.mrf.mxu0
        %v529 = vadd.f32 0.0, %v528
        %v530 = vpop.f32.mrf.mxu0
        %v531 = vadd.f32 0.0, %v530
        %532 = vmatprep.mubr.f32.mxu0 0.0
        %533 = vmatmul.mubr.f32.gmra.mxu0 %v379
        %v534 = vpop.f32.mrf.mxu0
        %v535 = vadd.f32 0.0, %v534
        %v536 = vpop.f32.mrf.mxu0
        %v537 = vadd.f32 0.0, %v536
        %538 = vmatprep.mubr.f32.mxu0 0.0
        %539 = vmatmul.mubr.f32.gmra.mxu0 %v382
        %v540 = vpop.f32.mrf.mxu0
        %v541 = vadd.f32 0.0, %v540
        %v542 = vpop.f32.mrf.mxu0
        %v543 = vadd.f32 0.0, %v542
        %544 = vdwg.mxu0
        %546 = vset.pattern.permute.xlu0 0
        %547 = vperm.xlu0 %546, %v319
        %v548 = vpop.permute.xlu0 %547
        %551 = vset.pattern.permute.xlu0 0
        %552 = vperm.xlu0 %551, %v320
        %v553 = vpop.permute.xlu0 %552
        %556 = vset.pattern.permute.xlu0 0
        %557 = vperm.xlu0 %556, %v321
        %v558 = vpop.permute.xlu0 %557
        %561 = vset.pattern.permute.xlu0 0
        %562 = vperm.xlu0 %561, %v322
        %v563 = vpop.permute.xlu0 %562
        %566 = vset.pattern.permute.xlu0 0
        %567 = vperm.xlu0 %566, %v323
        %v568 = vpop.permute.xlu0 %567
        %571 = vset.pattern.permute.xlu0 0
        %572 = vperm.xlu0 %571, %v324
        %v573 = vpop.permute.xlu0 %572
        %576 = vset.pattern.permute.xlu0 0
        %577 = vperm.xlu0 %576, %v325
        %v578 = vpop.permute.xlu0 %577
        %581 = vset.pattern.permute.xlu0 0
        %582 = vperm.xlu0 %581, %v326
        %v583 = vpop.permute.xlu0 %582
        %586 = vset.pattern.permute.xlu0 0
        %587 = vperm.xlu0 %586, %v327
        %v588 = vpop.permute.xlu0 %587
        %591 = vset.pattern.permute.xlu0 0
        %592 = vperm.xlu0 %591, %v328
        %v593 = vpop.permute.xlu0 %592
        %596 = vset.pattern.permute.xlu0 0
        %597 = vperm.xlu0 %596, %v329
        %v598 = vpop.permute.xlu0 %597
        %601 = vset.pattern.permute.xlu0 0
        %602 = vperm.xlu0 %601, %v330
        %v603 = vpop.permute.xlu0 %602
        %606 = vset.pattern.permute.xlu0 0
        %607 = vperm.xlu0 %606, %v331
        %v608 = vpop.permute.xlu0 %607
        %611 = vset.pattern.permute.xlu0 0
        %612 = vperm.xlu0 %611, %v332
        %v613 = vpop.permute.xlu0 %612
        %616 = vset.pattern.permute.xlu0 0
        %617 = vperm.xlu0 %616, %v333
        %v618 = vpop.permute.xlu0 %617
        %621 = vset.pattern.permute.xlu0 0
        %622 = vperm.xlu0 %621, %v334
        %v623 = vpop.permute.xlu0 %622
        %v625 = vmul.f32 %v451, %v548
        %v626 = vmul.f32 %v453, %v548
        %v627 = vmul.f32 %v457, %v553
        %v628 = vmul.f32 %v459, %v553
        %v629 = vmul.f32 %v463, %v558
        %v630 = vmul.f32 %v465, %v558
        %v631 = vmul.f32 %v469, %v563
        %v632 = vmul.f32 %v471, %v563
        %v633 = vmul.f32 %v475, %v568
        %v634 = vmul.f32 %v477, %v568
        %v635 = vmul.f32 %v481, %v573
        %v636 = vmul.f32 %v483, %v573
        %v637 = vmul.f32 %v487, %v578
        %v638 = vmul.f32 %v489, %v578
        %v639 = vmul.f32 %v493, %v583
        %v640 = vmul.f32 %v495, %v583
        %v641 = vmul.f32 %v499, %v588
        %v642 = vmul.f32 %v501, %v588
        %v643 = vmul.f32 %v505, %v593
        %v644 = vmul.f32 %v507, %v593
        %v645 = vmul.f32 %v511, %v598
        %v646 = vmul.f32 %v513, %v598
        %v647 = vmul.f32 %v517, %v603
        %v648 = vmul.f32 %v519, %v603
        %v649 = vmul.f32 %v523, %v608
        %v650 = vmul.f32 %v525, %v608
        %v651 = vmul.f32 %v529, %v613
        %v652 = vmul.f32 %v531, %v613
        %v653 = vmul.f32 %v535, %v618
        %v654 = vmul.f32 %v537, %v618
        %v655 = vmul.f32 %v541, %v623
        %v656 = vmul.f32 %v543, %v623
        %v657 = vmax.f32 %v625, %v629
        %v658 = vmax.f32 %v627, %v631
        %v659 = vmax.f32 %v657, %v633
        %v660 = vmax.f32 %v658, %v635
        %v661 = vmax.f32 %v659, %v637
        %v662 = vmax.f32 %v660, %v639
        %v663 = vmax.f32 %v661, %v641
        %v664 = vmax.f32 %v662, %v643
        %v665 = vmax.f32 %v663, %v645
        %v666 = vmax.f32 %v664, %v647
        %v667 = vmax.f32 %v665, %v649
        %v668 = vmax.f32 %v666, %v651
        %v669 = vmax.f32 %v667, %v653
        %v670 = vmax.f32 %v668, %v655
        %v671 = vmax.f32 %v669, %v670
        %v672 = vrot.slane %v671, 4
        %v673 = vmax.f32 %v671, %v672
        %v674 = vrot.slane %v673, 2
        %v675 = vmax.f32 %v673, %v674
        %v676 = vrot.slane %v675, 1
        %v677 = vmax.f32 %v675, %v676
        %v678 = vmax.f32 %v626, %v630
        %v679 = vmax.f32 %v628, %v632
        %v680 = vmax.f32 %v678, %v634
        %v681 = vmax.f32 %v679, %v636
        %v682 = vmax.f32 %v680, %v638
        %v683 = vmax.f32 %v681, %v640
        %v684 = vmax.f32 %v682, %v642
        %v685 = vmax.f32 %v683, %v644
        %v686 = vmax.f32 %v684, %v646
        %v687 = vmax.f32 %v685, %v648
        %v688 = vmax.f32 %v686, %v650
        %v689 = vmax.f32 %v687, %v652
        %v690 = vmax.f32 %v688, %v654
        %v691 = vmax.f32 %v689, %v656
        %v692 = vmax.f32 %v690, %v691
        %v693 = vrot.slane %v692, 4
        %v694 = vmax.f32 %v692, %v693
        %v695 = vrot.slane %v694, 2
        %v696 = vmax.f32 %v694, %v695
        %v697 = vrot.slane %v696, 1
        %v698 = vmax.f32 %v696, %v697
        %v699 = vlaneseq
        %v700 = vshrl.u32 %v699, 7
        %v701 = vadd.s32 %v700, 8
        %v702 = vadd.s32 %v700, 16
        %v703 = vadd.s32 %v700, 24
        %v704 = vadd.s32 %v700, 32
        %v705 = vadd.s32 %v700, 40
        %v706 = vadd.s32 %v700, 48
        %v707 = vadd.s32 %v700, 56
        %v708 = vadd.s32 %v700, 64
        %v709 = vadd.s32 %v700, 72
        %v710 = vadd.s32 %v700, 80
        %v711 = vadd.s32 %v700, 88
        %v712 = vadd.s32 %v700, 96
        %v713 = vadd.s32 %v700, 104
        %v714 = vadd.s32 %v700, 112
        %v715 = vadd.s32 %v700, 120
        %vm716 = vcmp.eq.f32.partialorder %v625, %v677
        %vm717 = vcmp.eq.f32.partialorder %v626, %v698
        %vm718 = vcmp.eq.f32.partialorder %v627, %v677
        %vm719 = vcmp.eq.f32.partialorder %v628, %v698
        %vm720 = vcmp.eq.f32.partialorder %v629, %v677
        %vm721 = vcmp.eq.f32.partialorder %v630, %v698
        %vm722 = vcmp.eq.f32.partialorder %v631, %v677
        %vm723 = vcmp.eq.f32.partialorder %v632, %v698
        %vm724 = vcmp.eq.f32.partialorder %v633, %v677
        %vm725 = vcmp.eq.f32.partialorder %v634, %v698
        %vm726 = vcmp.eq.f32.partialorder %v635, %v677
        %vm727 = vcmp.eq.f32.partialorder %v636, %v698
        %vm728 = vcmp.eq.f32.partialorder %v637, %v677
        %vm729 = vcmp.eq.f32.partialorder %v638, %v698
        %vm730 = vcmp.eq.f32.partialorder %v639, %v677
        %vm731 = vcmp.eq.f32.partialorder %v640, %v698
        %vm732 = vcmp.eq.f32.partialorder %v641, %v677
        %vm733 = vcmp.eq.f32.partialorder %v642, %v698
        %vm734 = vcmp.eq.f32.partialorder %v643, %v677
        %vm735 = vcmp.eq.f32.partialorder %v644, %v698
        %vm736 = vcmp.eq.f32.partialorder %v645, %v677
        %vm737 = vcmp.eq.f32.partialorder %v646, %v698
        %vm738 = vcmp.eq.f32.partialorder %v647, %v677
        %vm739 = vcmp.eq.f32.partialorder %v648, %v698
        %vm740 = vcmp.eq.f32.partialorder %v649, %v677
        %vm741 = vcmp.eq.f32.partialorder %v650, %v698
        %vm742 = vcmp.eq.f32.partialorder %v651, %v677
        %vm743 = vcmp.eq.f32.partialorder %v652, %v698
        %vm744 = vcmp.eq.f32.partialorder %v653, %v677
        %vm745 = vcmp.eq.f32.partialorder %v654, %v698
        %vm746 = vcmp.eq.f32.partialorder %v655, %v677
        %vm747 = vcmp.eq.f32.partialorder %v656, %v698
        %v748 = vsel %vm716, %v700, 128
        %v749 = vsel %vm717, %v700, 128
        %v750 = vsel %vm718, %v701, 128
        %v751 = vsel %vm719, %v701, 128
        %v752 = vsel %vm720, %v702, 128
        %v753 = vsel %vm721, %v702, 128
        %v754 = vsel %vm722, %v703, 128
        %v755 = vsel %vm723, %v703, 128
        %v756 = vsel %vm724, %v704, 128
        %v757 = vsel %vm725, %v704, 128
        %v758 = vsel %vm726, %v705, 128
        %v759 = vsel %vm727, %v705, 128
        %v760 = vsel %vm728, %v706, 128
        %v761 = vsel %vm729, %v706, 128
        %v762 = vsel %vm730, %v707, 128
        %v763 = vsel %vm731, %v707, 128
        %v764 = vsel %vm732, %v708, 128
        %v765 = vsel %vm733, %v708, 128
        %v766 = vsel %vm734, %v709, 128
        %v767 = vsel %vm735, %v709, 128
        %v768 = vsel %vm736, %v710, 128
        %v769 = vsel %vm737, %v710, 128
        %v770 = vsel %vm738, %v711, 128
        %v771 = vsel %vm739, %v711, 128
        %v772 = vsel %vm740, %v712, 128
        %v773 = vsel %vm741, %v712, 128
        %v774 = vsel %vm742, %v713, 128
        %v775 = vsel %vm743, %v713, 128
        %v776 = vsel %vm744, %v714, 128
        %v777 = vsel %vm745, %v714, 128
        %v778 = vsel %vm746, %v715, 128
        %v779 = vsel %vm747, %v715, 128
        %vm780 = vcmp.lt.s32.totalorder %v748, %v752
        %v781 = vsel %vm780, %v748, %v752
        %vm782 = vcmp.lt.s32.totalorder %v750, %v754
        %v783 = vsel %vm782, %v750, %v754
        %vm784 = vcmp.lt.s32.totalorder %v781, %v756
        %v785 = vsel %vm784, %v781, %v756
        %vm786 = vcmp.lt.s32.totalorder %v783, %v758
        %v787 = vsel %vm786, %v783, %v758
        %vm788 = vcmp.lt.s32.totalorder %v785, %v760
        %v789 = vsel %vm788, %v785, %v760
        %vm790 = vcmp.lt.s32.totalorder %v787, %v762
        %v791 = vsel %vm790, %v787, %v762
        %vm792 = vcmp.lt.s32.totalorder %v789, %v764
        %v793 = vsel %vm792, %v789, %v764
        %vm794 = vcmp.lt.s32.totalorder %v791, %v766
        %v795 = vsel %vm794, %v791, %v766
        %vm796 = vcmp.lt.s32.totalorder %v793, %v768
        %v797 = vsel %vm796, %v793, %v768
        %vm798 = vcmp.lt.s32.totalorder %v795, %v770
        %v799 = vsel %vm798, %v795, %v770
        %vm800 = vcmp.lt.s32.totalorder %v797, %v772
        %v801 = vsel %vm800, %v797, %v772
        %vm802 = vcmp.lt.s32.totalorder %v799, %v774
        %v803 = vsel %vm802, %v799, %v774
        %vm804 = vcmp.lt.s32.totalorder %v801, %v776
        %v805 = vsel %vm804, %v801, %v776
        %vm806 = vcmp.lt.s32.totalorder %v803, %v778
        %v807 = vsel %vm806, %v803, %v778
        %vm808 = vcmp.lt.s32.totalorder %v805, %v807
        %v809 = vsel %vm808, %v805, %v807
        %v810 = vrot.slane %v809, 4
        %vm811 = vcmp.lt.s32.totalorder %v809, %v810
        %v812 = vsel %vm811, %v809, %v810
        %v813 = vrot.slane %v812, 2
        %vm814 = vcmp.lt.s32.totalorder %v812, %v813
        %v815 = vsel %vm814, %v812, %v813
        %v816 = vrot.slane %v815, 1
        %vm817 = vcmp.lt.s32.totalorder %v815, %v816
        %v818 = vsel %vm817, %v815, %v816
        %vm819 = vcmp.lt.s32.totalorder %v749, %v753
        %v820 = vsel %vm819, %v749, %v753
        %vm821 = vcmp.lt.s32.totalorder %v751, %v755
        %v822 = vsel %vm821, %v751, %v755
        %vm823 = vcmp.lt.s32.totalorder %v820, %v757
        %v824 = vsel %vm823, %v820, %v757
        %vm825 = vcmp.lt.s32.totalorder %v822, %v759
        %v826 = vsel %vm825, %v822, %v759
        %vm827 = vcmp.lt.s32.totalorder %v824, %v761
        %v828 = vsel %vm827, %v824, %v761
        %vm829 = vcmp.lt.s32.totalorder %v826, %v763
        %v830 = vsel %vm829, %v826, %v763
        %vm831 = vcmp.lt.s32.totalorder %v828, %v765
        %v832 = vsel %vm831, %v828, %v765
        %vm833 = vcmp.lt.s32.totalorder %v830, %v767
        %v834 = vsel %vm833, %v830, %v767
        %vm835 = vcmp.lt.s32.totalorder %v832, %v769
        %v836 = vsel %vm835, %v832, %v769
        %vm837 = vcmp.lt.s32.totalorder %v834, %v771
        %v838 = vsel %vm837, %v834, %v771
        %vm839 = vcmp.lt.s32.totalorder %v836, %v773
        %v840 = vsel %vm839, %v836, %v773
        %vm841 = vcmp.lt.s32.totalorder %v838, %v775
        %v842 = vsel %vm841, %v838, %v775
        %vm843 = vcmp.lt.s32.totalorder %v840, %v777
        %v844 = vsel %vm843, %v840, %v777
        %vm845 = vcmp.lt.s32.totalorder %v842, %v779
        %v846 = vsel %vm845, %v842, %v779
        %vm847 = vcmp.lt.s32.totalorder %v844, %v846
        %v848 = vsel %vm847, %v844, %v846
        %v849 = vrot.slane %v848, 4
        %vm850 = vcmp.lt.s32.totalorder %v848, %v849
        %v851 = vsel %vm850, %v848, %v849
        %v852 = vrot.slane %v851, 2
        %vm853 = vcmp.lt.s32.totalorder %v851, %v852
        %v854 = vsel %vm853, %v851, %v852
        %v855 = vrot.slane %v854, 1
        %vm856 = vcmp.lt.s32.totalorder %v854, %v855
        %v857 = vsel %vm856, %v854, %v855
        %vm858 = vcmp.eq.s32.totalorder %v700, %v818
        %vm859 = vcmp.eq.s32.totalorder %v700, %v857
        %vm860 = vcmp.eq.s32.totalorder %v701, %v818
        %vm861 = vcmp.eq.s32.totalorder %v701, %v857
        %vm862 = vcmp.eq.s32.totalorder %v702, %v818
        %vm863 = vcmp.eq.s32.totalorder %v702, %v857
        %vm864 = vcmp.eq.s32.totalorder %v703, %v818
        %vm865 = vcmp.eq.s32.totalorder %v703, %v857
        %vm866 = vcmp.eq.s32.totalorder %v704, %v818
        %vm867 = vcmp.eq.s32.totalorder %v704, %v857
        %vm868 = vcmp.eq.s32.totalorder %v705, %v818
        %vm869 = vcmp.eq.s32.totalorder %v705, %v857
        %vm870 = vcmp.eq.s32.totalorder %v706, %v818
        %vm871 = vcmp.eq.s32.totalorder %v706, %v857
        %vm872 = vcmp.eq.s32.totalorder %v707, %v818
        %vm873 = vcmp.eq.s32.totalorder %v707, %v857
        %vm874 = vcmp.eq.s32.totalorder %v708, %v818
        %vm875 = vcmp.eq.s32.totalorder %v708, %v857
        %vm876 = vcmp.eq.s32.totalorder %v709, %v818
        %vm877 = vcmp.eq.s32.totalorder %v709, %v857
        %vm878 = vcmp.eq.s32.totalorder %v710, %v818
        %vm879 = vcmp.eq.s32.totalorder %v710, %v857
        %vm880 = vcmp.eq.s32.totalorder %v711, %v818
        %vm881 = vcmp.eq.s32.totalorder %v711, %v857
        %vm882 = vcmp.eq.s32.totalorder %v712, %v818
        %vm883 = vcmp.eq.s32.totalorder %v712, %v857
        %vm884 = vcmp.eq.s32.totalorder %v713, %v818
        %vm885 = vcmp.eq.s32.totalorder %v713, %v857
        %vm886 = vcmp.eq.s32.totalorder %v714, %v818
        %vm887 = vcmp.eq.s32.totalorder %v714, %v857
        %vm888 = vcmp.eq.s32.totalorder %v715, %v818
        %vm889 = vcmp.eq.s32.totalorder %v715, %v857
        %v890 = vsel %vm858, 1, 0
        %v891 = vsel %vm859, 1, 0
        %v892 = vsel %vm860, 1, 0
        %v893 = vsel %vm861, 1, 0
        %v894 = vsel %vm862, 1, 0
        %v895 = vsel %vm863, 1, 0
        %v896 = vsel %vm864, 1, 0
        %v897 = vsel %vm865, 1, 0
        %v898 = vsel %vm866, 1, 0
        %v899 = vsel %vm867, 1, 0
        %v900 = vsel %vm868, 1, 0
        %v901 = vsel %vm869, 1, 0
        %v902 = vsel %vm870, 1, 0
        %v903 = vsel %vm871, 1, 0
        %v904 = vsel %vm872, 1, 0
        %v905 = vsel %vm873, 1, 0
        %v906 = vsel %vm874, 1, 0
        %v907 = vsel %vm875, 1, 0
        %v908 = vsel %vm876, 1, 0
        %v909 = vsel %vm877, 1, 0
        %v910 = vsel %vm878, 1, 0
        %v911 = vsel %vm879, 1, 0
        %v912 = vsel %vm880, 1, 0
        %v913 = vsel %vm881, 1, 0
        %v914 = vsel %vm882, 1, 0
        %v915 = vsel %vm883, 1, 0
        %v916 = vsel %vm884, 1, 0
        %v917 = vsel %vm885, 1, 0
        %v918 = vsel %vm886, 1, 0
        %v919 = vsel %vm887, 1, 0
        %v920 = vsel %vm888, 1, 0
        %v921 = vsel %vm889, 1, 0
        %v922 = vcvt.s32.f32 %v890
        %v923 = vcvt.s32.f32 %v891
        %v924 = vcvt.s32.f32 %v892
        %v925 = vcvt.s32.f32 %v893
        %v926 = vcvt.s32.f32 %v894
        %v927 = vcvt.s32.f32 %v895
        %v928 = vcvt.s32.f32 %v896
        %v929 = vcvt.s32.f32 %v897
        %v930 = vcvt.s32.f32 %v898
        %v931 = vcvt.s32.f32 %v899
        %v932 = vcvt.s32.f32 %v900
        %v933 = vcvt.s32.f32 %v901
        %v934 = vcvt.s32.f32 %v902
        %v935 = vcvt.s32.f32 %v903
        %v936 = vcvt.s32.f32 %v904
        %v937 = vcvt.s32.f32 %v905
        %v938 = vcvt.s32.f32 %v906
        %v939 = vcvt.s32.f32 %v907
        %v940 = vcvt.s32.f32 %v908
        %v941 = vcvt.s32.f32 %v909
        %v942 = vcvt.s32.f32 %v910
        %v943 = vcvt.s32.f32 %v911
        %v944 = vcvt.s32.f32 %v912
        %v945 = vcvt.s32.f32 %v913
        %v946 = vcvt.s32.f32 %v914
        %v947 = vcvt.s32.f32 %v915
        %v948 = vcvt.s32.f32 %v916
        %v949 = vcvt.s32.f32 %v917
        %v950 = vcvt.s32.f32 %v918
        %v951 = vcvt.s32.f32 %v919
        %v952 = vcvt.s32.f32 %v920
        %v953 = vcvt.s32.f32 %v921
        %954 = vxpose.xlu0.b32.start [1/16] %v303, 128
        %955 = vxpose.xlu0.b32.cont [2/16] %v304, 128
        %956 = vxpose.xlu0.b32.cont [3/16] %v305, 128
        %957 = vxpose.xlu0.b32.cont [4/16] %v306, 128
        %958 = vxpose.xlu0.b32.cont [5/16] %v307, 128
        %959 = vxpose.xlu0.b32.cont [6/16] %v308, 128
        %960 = vxpose.xlu0.b32.cont [7/16] %v309, 128
        %961 = vxpose.xlu0.b32.cont [8/16] %v310, 128
        %962 = vxpose.xlu0.b32.cont [9/16] %v311, 128
        %963 = vxpose.xlu0.b32.cont [10/16] %v312, 128
        %964 = vxpose.xlu0.b32.cont [11/16] %v313, 128
        %965 = vxpose.xlu0.b32.cont [12/16] %v314, 128
        %966 = vxpose.xlu0.b32.cont [13/16] %v315, 128
        %967 = vxpose.xlu0.b32.cont [14/16] %v316, 128
        %968 = vxpose.xlu0.b32.cont [15/16] %v317, 128
        %969 = vxpose.xlu0.b32.end [16/16] %v318, 128
        %v970 = vpop.trf.xlu0
        %v971 = vpop.trf.xlu0
        %v972 = vpop.trf.xlu0
        %v973 = vpop.trf.xlu0
        %v974 = vpop.trf.xlu0
        %v975 = vpop.trf.xlu0
        %v976 = vpop.trf.xlu0
        %v977 = vpop.trf.xlu0
        %v978 = vpop.trf.xlu0
        %v979 = vpop.trf.xlu0
        %v980 = vpop.trf.xlu0
        %v981 = vpop.trf.xlu0
        %v982 = vpop.trf.xlu0
        %v983 = vpop.trf.xlu0
        %v984 = vpop.trf.xlu0
        %v985 = vpop.trf.xlu0
        %986 = vmatprep.subr.mxu0 %v953
        %987 = vmatpush1.msra.mxu0 %v952
        %988 = vmatprep.subr.mxu0 %v951
        %989 = vmatpush1.msra.mxu0 %v950
        %990 = vmatprep.subr.mxu0 %v949
        %991 = vmatpush1.msra.mxu0 %v948
        %992 = vmatprep.subr.mxu0 %v947
        %993 = vmatpush1.msra.mxu0 %v946
        %994 = vmatprep.subr.mxu0 %v945
        %995 = vmatpush1.msra.mxu0 %v944
        %996 = vmatprep.subr.mxu0 %v943
        %997 = vmatpush1.msra.mxu0 %v942
        %998 = vmatprep.subr.mxu0 %v941
        %999 = vmatpush1.msra.mxu0 %v940
        %1000 = vmatprep.subr.mxu0 %v939
        %1001 = vmatpush1.msra.mxu0 %v938
        %1002 = vmatprep.subr.mxu0 %v937
        %1003 = vmatpush1.msra.mxu0 %v936
        %1004 = vmatprep.subr.mxu0 %v935
        %1005 = vmatpush1.msra.mxu0 %v934
        %1006 = vmatprep.subr.mxu0 %v933
        %1007 = vmatpush1.msra.mxu0 %v932
        %1008 = vmatprep.subr.mxu0 %v931
        %1009 = vmatpush1.msra.mxu0 %v930
        %1010 = vmatprep.subr.mxu0 %v929
        %1011 = vmatpush1.msra.mxu0 %v928
        %1012 = vmatprep.subr.mxu0 %v927
        %1013 = vmatpush1.msra.mxu0 %v926
        %1014 = vmatprep.subr.mxu0 %v925
        %1015 = vmatpush1.msra.mxu0 %v924
        %1016 = vmatprep.subr.mxu0 %v923
        %1017 = vmatpush1.msra.mxu0 %v922
        %1018 = vmatprep.subr.mxu0 0.0
        %1019 = vmatpush2.msra.mxu0 0.0
        %1020 = vmatprep.subr.mxu0 0.0
        %1021 = vmatpush2.msra.mxu0 0.0
        %1022 = vmatprep.subr.mxu0 0.0
        %1023 = vmatpush2.msra.mxu0 0.0
        %1024 = vmatprep.subr.mxu0 0.0
        %1025 = vmatpush2.msra.mxu0 0.0
        %1026 = vmatprep.subr.mxu0 0.0
        %1027 = vmatpush2.msra.mxu0 0.0
        %1028 = vmatprep.subr.mxu0 0.0
        %1029 = vmatpush2.msra.mxu0 0.0
        %1030 = vmatprep.subr.mxu0 0.0
        %1031 = vmatpush2.msra.mxu0 0.0
        %1032 = vmatprep.subr.mxu0 0.0
        %1033 = vmatpush2.msra.mxu0 0.0
        %1034 = vmatprep.subr.mxu0 0.0
        %1035 = vmatpush2.msra.mxu0 0.0
        %1036 = vmatprep.subr.mxu0 0.0
        %1037 = vmatpush2.msra.mxu0 0.0
        %1038 = vmatprep.subr.mxu0 0.0
        %1039 = vmatpush2.msra.mxu0 0.0
        %1040 = vmatprep.subr.mxu0 0.0
        %1041 = vmatpush2.msra.mxu0 0.0
        %1042 = vmatprep.subr.mxu0 0.0
        %1043 = vmatpush2.msra.mxu0 0.0
        %1044 = vmatprep.subr.mxu0 0.0
        %1045 = vmatpush2.msra.mxu0 0.0
        %1046 = vmatprep.subr.mxu0 0.0
        %1047 = vmatpush2.msra.mxu0 0.0
        %1048 = vmatprep.subr.mxu0 0.0
        %1049 = vmatpush2.msra.mxu0 0.0
        %1050 = vmatprep.mubr.f32.mxu0 0.0
        %1051 = vmatmul.mubr.f32.gmra.mxu0 %v970
        %v1052 = vpop.f32.mrf.mxu0
        %v1053 = vadd.f32 0.0, %v1052
        %v1054 = vpop.f32.mrf.mxu0
        %v1055 = vadd.f32 0.0, %v1054
        %1056 = vmatprep.mubr.f32.mxu0 0.0
        %1057 = vmatmul.mubr.f32.gmra.mxu0 %v971
        %v1058 = vpop.f32.mrf.mxu0
        %v1059 = vadd.f32 0.0, %v1058
        %v1060 = vpop.f32.mrf.mxu0
        %v1061 = vadd.f32 0.0, %v1060
        %1062 = vmatprep.mubr.f32.mxu0 0.0
        %1063 = vmatmul.mubr.f32.gmra.mxu0 %v972
        %v1064 = vpop.f32.mrf.mxu0
        %v1065 = vadd.f32 0.0, %v1064
        %v1066 = vpop.f32.mrf.mxu0
        %v1067 = vadd.f32 0.0, %v1066
        %1068 = vmatprep.mubr.f32.mxu0 0.0
        %1069 = vmatmul.mubr.f32.gmra.mxu0 %v973
        %v1070 = vpop.f32.mrf.mxu0
        %v1071 = vadd.f32 0.0, %v1070
        %v1072 = vpop.f32.mrf.mxu0
        %v1073 = vadd.f32 0.0, %v1072
        %1074 = vdwg.mxu0
        %1075 = vst [vmem:[%s284] sm:$0xff] %v1053
        %1076 = vst [vmem:[%s284 + $0x8] sm:$0xff] %v1055
        %1077 = vst [vmem:[%s284 + $0x10] sm:$0xff] %v1059
        %1078 = vst [vmem:[%s284 + $0x18] sm:$0xff] %v1061
        %1079 = vst [vmem:[%s284 + $0x20] sm:$0xff] %v1065
        %1080 = vst [vmem:[%s284 + $0x28] sm:$0xff] %v1067
        %1081 = vst [vmem:[%s284 + $0x30] sm:$0xff] %v1071
        %1082 = vst [vmem:[%s284 + $0x38] sm:$0xff] %v1073
        %v1083 = vcombine.low %v818, %v857
        %v1085 = vunpack.c.l.s4 1966171168
        %v1086 = vunpack.c.0.s8 %v1085
        %v1087 = vlaneseq
        %v1088 = vshrl.u32 %v1087, 7
        %v1089 = vsub.s32 %v1086, %v1088
        %v1090 = vrot.slane %v1083, %v1089
        %v1092 = vunpack.c.l.s4 1966171168
        %v1093 = vunpack.c.0.s8 %v1092
        %v1094 = vlaneseq
        %v1095 = vshrl.u32 %v1094, 7
        %v1096 = vsub.s32 %v1093, %v1095
        %v1097 = vrot.slane %v1090, %v1096
        %v1098 = vlaneseq
        %vm1099 = vcmp.ge.s32.totalorder %v1098, 0
        %vm1100 = vcmp.lt.s32.totalorder %v1098, 256
        %vm1101 = vmand %vm1099, %vm1100
        %1102 = vst.msk [vmem:[%s258] sm:$0x3] %vm1101, %v1097
        %v1103 = vsub.f32 %v1053, %v295
        %v1104 = vsub.f32 %v1055, %v296
        %v1105 = vsub.f32 %v1059, %v297
        %v1106 = vsub.f32 %v1061, %v298
        %v1107 = vsub.f32 %v1065, %v299
        %v1108 = vsub.f32 %v1067, %v300
        %v1109 = vsub.f32 %v1071, %v301
        %v1110 = vsub.f32 %v1073, %v302
        %v1111 = vmul.f32 %v1103, %v1103
        %v1112 = vmul.f32 %v1104, %v1104
        %v1113 = vmul.f32 %v1105, %v1105
        %v1114 = vmul.f32 %v1106, %v1106
        %v1115 = vmul.f32 %v1107, %v1107
        %v1116 = vmul.f32 %v1108, %v1108
        %v1117 = vmul.f32 %v1109, %v1109
        %v1118 = vmul.f32 %v1110, %v1110
        %v1119 = vadd.f32 %v1111, %v1113
        %v1120 = vadd.f32 %v1119, %v1115
        %v1121 = vadd.f32 %v1120, %v1117
        %v1122 = vrot.slane %v1121, 4
        %v1123 = vadd.f32 %v1121, %v1122
        %v1124 = vrot.slane %v1123, 2
        %v1125 = vadd.f32 %v1123, %v1124
        %v1126 = vrot.slane %v1125, 1
        %v1127 = vadd.f32 %v1125, %v1126
        %v1128 = vadd.f32 %v1112, %v1114
        %v1129 = vadd.f32 %v1128, %v1116
        %v1130 = vadd.f32 %v1129, %v1118
        %v1131 = vrot.slane %v1130, 4
        %v1132 = vadd.f32 %v1130, %v1131
        %v1133 = vrot.slane %v1132, 2
        %v1134 = vadd.f32 %v1132, %v1133
        %v1135 = vrot.slane %v1134, 1
        %v1136 = vadd.f32 %v1134, %v1135
        %v1139 = vcombine.low %v1127, %v1136
        %v1141 = vunpack.c.l.s4 1966171168
        %v1142 = vunpack.c.0.s8 %v1141
        %v1143 = vlaneseq
        %v1144 = vshrl.u32 %v1143, 7
        %v1145 = vsub.s32 %v1142, %v1144
        %v1146 = vrot.slane %v1139, %v1145
        %v1148 = vunpack.c.l.s4 1966171168
        %v1149 = vunpack.c.0.s8 %v1148
        %v1150 = vlaneseq
        %v1151 = vshrl.u32 %v1150, 7
        %v1152 = vsub.s32 %v1149, %v1151
        %v1153 = vrot.slane %v1146, %v1152
        %1155 = vst.msk [vmem:[%s292] sm:$0x3] %vm1101, %v1153
        %s1156 = smul.u32 2, %s25
        %p1157 = scmp.lt.s32.totalorder %s24, 1
        %s1158 = scalar_select %p1157, %s24, 1
        %p1159 = scmp.lt.s32.totalorder %s1156, 1
        %s1160 = scalar_select %p1159, %s1156, 1
        %s1161 = smul.addr %s1158, 8
        %s1162 = sadd.s32 %s1160, %s1161
        %s1163 = smul.addr %s1162, 8
        %s1164 = scalar_lea.vmem %s3, %s1163
        %s1165 = sand.u32 %s140, 1
        %s1166 = scalar_lea.sflag [#allocation3], %s1165
        %s1167 = sand.u32 %s140, 1
        %s1168 = smul.addr %s1167, 2
        %s1169 = scalar_lea.vmem [#allocation2], %s1168
        %s1170 = sadd.s32 %s24, %s25
        %s1171 = smul.u32 2, %s1170
        %p1172 = scmp.lt.s32.totalorder %s1171, 3
        %s1173 = scalar_select %p1172, %s1171, 3
        %s1174 = scalar_lea.vmem %s5, %s1173
        // Predicated region
        $region33: #{_lambda_.1} parent=31 // pred_check
          %p1175 = pneg %p122
        $region34: #{_lambda_.1} parent=31 // pred_check_branch
          %1177 = sbr.rel (%p1175) target = $region36
        $region35: #{_lambda_.1} parent=31 // pred_region
          %s1178 = smul.u32 2, %s25
        $region36: #{_lambda_.1} parent=31 // pred_fallthru
          _
        // Predicated region
        $region37: #{_lambda_.1} parent=31 // pred_check
          %p1179 = pneg %p150
        $region38: #{_lambda_.1} parent=31 // pred_check_branch
          %1181 = sbr.rel (%p1179) target = $region40
        $region39: #{_lambda_.1} parent=31 // pred_region
          %s1182 = sadd.s32 %s24, %s25
          %s1183 = smul.u32 2, %s1182
          %s1185 = ssub.s32 32, 32
          %1186 = vsyncadd %s1166, %s1185
          %s1187 = smul.addr %s1183, 16
          %s1188 = scalar_lea.hbm %s4, %s1187
          %s1190 = sshll.u32 %s1169, 4
          %s1191 = int_to_ptr.vmem [resolvable:$true] %s1190
          %1193 = dma.vmem_to_hbm [thread:$0]  %s1191, 32, %s1188, %s1166
        $region40: #{_lambda_.1} parent=31 // pred_fallthru
          _
        // Predicated region
        $region41: #{_lambda_.1} parent=31 // pred_check
          %p1194 = pneg %p178
        $region42: #{_lambda_.1} parent=31 // pred_check_branch
          %1196 = sbr.rel (%p1194) target = $region44
        $region43: #{_lambda_.1} parent=31 // pred_region
          %s1197 = sadd.s32 %s24, %s25
          %s1198 = smul.u32 2, %s1197
        $region44: #{_lambda_.1} parent=31 // pred_fallthru
          _
      $region32: #{_lambda_.1} parent=5 // pred_fallthru
        _
      %p1199 = scmp.le.s32.totalorder 2, %s15
      // Predicated region
      $region45: #{_lambda_.1} parent=5 // pred_check
        %p1200 = pneg %p1199
      $region46: #{_lambda_.1} parent=5 // pred_check_branch
        %1202 = sbr.rel (%p1200) target = $region48
      $region47: #{_lambda_.1} parent=5 // pred_region
        %s1203 = ssub.s32 %s15, 2
        // Predicated region
        $region49: #{_lambda_.1} parent=47 // pred_check
          %p1204 = pneg %p128
        $region50: #{_lambda_.1} parent=47 // pred_check_branch
          %1206 = sbr.rel (%p1204) target = $region52
        $region51: #{_lambda_.1} parent=47 // pred_region
          %s1207 = smul.u32 2, %s27
          %p1208 = scmp.lt.s32.totalorder %s26, 1
          %s1209 = scalar_select %p1208, %s26, 1
          %p1210 = scmp.lt.s32.totalorder %s1207, 1
          %s1211 = scalar_select %p1210, %s1207, 1
          %s1212 = smul.addr %s1209, 8
          %s1213 = sadd.s32 %s1211, %s1212
          %s1214 = smul.addr %s1213, 8
          %s1215 = scalar_lea.vmem %s3, %s1214
        $region52: #{_lambda_.1} parent=47 // pred_fallthru
          _
        // Predicated region
        $region53: #{_lambda_.1} parent=47 // pred_check
          %p1216 = pneg %p156
        $region54: #{_lambda_.1} parent=47 // pred_check_branch
          %1218 = sbr.rel (%p1216) target = $region56
        $region55: #{_lambda_.1} parent=47 // pred_region
          %s1219 = sand.u32 %s141, 1
          %s1220 = scalar_lea.sflag [#allocation3], %s1219
          %s1221 = sand.u32 %s141, 1
          %s1222 = smul.addr %s1221, 2
          %s1223 = scalar_lea.vmem [#allocation2], %s1222
          %1224 = dma.done %s1220, 32
        $region56: #{_lambda_.1} parent=47 // pred_fallthru
          _
        // Predicated region
        $region57: #{_lambda_.1} parent=47 // pred_check
          %p1225 = pneg %p184
        $region58: #{_lambda_.1} parent=47 // pred_check_branch
          %1227 = sbr.rel (%p1225) target = $region60
        $region59: #{_lambda_.1} parent=47 // pred_region
          %s1228 = sadd.s32 %s26, %s27
          %s1229 = smul.u32 2, %s1228
          %p1230 = scmp.lt.s32.totalorder %s1229, 3
          %s1231 = scalar_select %p1230, %s1229, 3
          %s1232 = scalar_lea.vmem %s5, %s1231
        $region60: #{_lambda_.1} parent=47 // pred_fallthru
          _
      $region48: #{_lambda_.1} parent=5 // pred_fallthru
        _
    $region6: #{_lambda_.1} parent=1 // loop_footer
      %s19 = sadd.s32 1, %s15
    $region7: #{_lambda_.1} parent=1 // loop_footer_branch
      %14 = sbr.rel target = $region3
    $region8: #{_lambda_.1} parent=1 // loop_exit
      _
    %1233 = vsyncpa [#allocation3], 1
    %s1234 = scalar_lea.sflag [#allocation3], 1
    %1235 = vsyncpa %s1234, 1

</llo_original>
